<compile_context>
chip_gen: v5e
topology: v5e:2x2
jax: 0.10.0
libtpu: 0.0.40
codegen_flags: <defaults>
</compile_context>

<pallas_src>
import jax
import jax.numpy as jnp
import numpy as np
from jax.experimental import pallas as pl
from jax.experimental.pallas import tpu as pltpu


def _locked_dropout_kernel(x_ref, m_ref, o_ref):
    # x_ref: (T_TILE, C_TILE); m_ref: (1, C_TILE) broadcasts over rows (VPU).
    o_ref[...] = x_ref[...] * m_ref[...]


def _choose_tiles(T, C, itemsize):
    """Pick big, (sublane, lane)-aligned tiles targeting ~2 MiB of x per block."""
    lane_align = 128
    sub_align = 8 * max(1, 4 // itemsize)        # 8 (f32), 16 (bf16), 32 (int8/fp8)
    max_elems = (2 * 1024 * 1024) // itemsize    # ~2 MiB of x per block

    # Lane (last) dim first: full extent if it fits, else a multiple of 128.
    if C <= max_elems:
        c_tile = C
    else:
        c_tile = max(lane_align, (max_elems // lane_align) * lane_align)

    # Sublane dim with the remaining budget: full extent or a multiple of align.
    rows = max(1, max_elems // c_tile)
    if T <= rows:
        t_tile = T
    else:
        t_tile = max(sub_align, (rows // sub_align) * sub_align)
    return t_tile, c_tile


def locked_dropout(x, *, seed=0, training=False, rate=0.5):
    """Pallas implementation of LockedDropout.forward.

    x: (T, B, H) array.  Returns x unchanged when not training or rate == 0.
    The dropout mask is deterministic given `seed`.
    """
    if rate == 0 or training is False:
        return x

    T, B, H = x.shape
    C = B * H
    x2 = x.reshape(T, C)

    # Locked mask: one Bernoulli draw per (b, h), broadcast over T.
    # Built in plain JAX (tiny: 1 x C) and handed to the kernel in x.dtype.
    keep = jax.random.bernoulli(jax.random.PRNGKey(seed), p=1.0 - rate, shape=(1, C))
    scale = jnp.asarray(1.0 / (1.0 - rate), dtype=x.dtype)
    mask = keep.astype(x.dtype) * scale

    itemsize = jnp.dtype(x.dtype).itemsize
    t_tile, c_tile = _choose_tiles(T, C, itemsize)
    grid = (pl.cdiv(T, t_tile), pl.cdiv(C, c_tile))

    out = pl.pallas_call(
        _locked_dropout_kernel,
        out_shape=jax.ShapeDtypeStruct((T, C), x.dtype),
        grid=grid,
        in_specs=[
            pl.BlockSpec((t_tile, c_tile), lambda ti, ci: (ti, ci)),
            pl.BlockSpec((1, c_tile), lambda ti, ci: (0, ci)),
        ],
        out_specs=pl.BlockSpec((t_tile, c_tile), lambda ti, ci: (ti, ci)),
        compiler_params=pltpu.CompilerParams(
            # No cross-iteration state -> both axes independent (lets the v7x
            # megacore shard the grid across its 2 TensorCores).
            dimension_semantics=("parallel", "parallel"),
        ),
    )(x2, mask)

    return out.reshape(T, B, H)


if __name__ == "__main__":
    key = jax.random.PRNGKey(0)
    T, B, H = 8, 4, 32  # (seq, batch, hidden)
    x = jax.random.normal(key, (T, B, H), dtype=jnp.float32)
    rate = 0.5
    seed = 1234

    # Inference path (training=False): identity.
    y_eval = jax.block_until_ready(locked_dropout(x, training=False, rate=rate))
    assert np.allclose(np.asarray(y_eval), np.asarray(x))

    # Training path: locked dropout via the Pallas kernel.
    y = jax.block_until_ready(locked_dropout(x, seed=seed, training=True, rate=rate))

    # Reference: same mask construction as the wrapper, applied in plain JAX.
    keep_ref = jax.random.bernoulli(jax.random.PRNGKey(seed), p=1.0 - rate, shape=(1, B * H))
    expected = (x.reshape(T, B * H) * keep_ref.astype(x.dtype) * (1.0 / (1.0 - rate))).reshape(T, B, H)
    assert np.allclose(np.asarray(y), np.asarray(expected), atol=1e-6), "kernel output mismatch"

    # Sanity checks of the "locked" semantics:
    #  - implied mask y/x is identical across the T axis
    #  - mask values are either 0 or 1/(1-rate)
    xn, yn = np.asarray(x), np.asarray(y)
    with np.errstate(divide="ignore", invalid="ignore"):
        ratio = np.where(np.abs(xn) > 1e-6, yn / xn, np.nan)
    ref_row = ratio[0]
    for t in range(1, T):
        same = np.isnan(ratio[t]) | np.isnan(ref_row) | np.isclose(ratio[t], ref_row, atol=1e-5)
        assert same.all(), "mask not locked across time axis"
    vals = ratio[~np.isnan(ratio)]
    ok_vals = np.isclose(vals, 0.0, atol=1e-5) | np.isclose(vals, 1.0 / (1.0 - rate), atol=1e-4)
    assert ok_vals.all(), "mask values not in {0, 1/(1-rate)}"

    print("KERNEL_OK")
</pallas_src>

<mosaic_0001>
module attributes {stable_mosaic.version = 11 : i64} {
  func.func @_locked_dropout_kernel(%arg0: i32, %arg1: i32, %arg2: memref<8x128xf32, #tpu.memory_space<vmem>>, %arg3: memref<1x128xf32, #tpu.memory_space<vmem>>, %arg4: memref<8x128xf32, #tpu.memory_space<vmem>>) attributes {dimension_semantics = [#tpu.dimension_semantics<parallel>, #tpu.dimension_semantics<parallel>], iteration_bounds = array<i64: 1, 1>, scalar_prefetch = 0 : i64, scratch_operands = 0 : i64, tpu.core_type = #tpu.core_type<tc>, window_params = [{transform_indices = @transform_0, window_bounds = array<i64: 8, 128>}, {transform_indices = @transform_1, window_bounds = array<i64: 1, 128>}, {transform_indices = @transform_2, window_bounds = array<i64: 8, 128>}]} {
    %c0 = arith.constant 0 : index
    %c0_0 = arith.constant 0 : index
    %0 = vector.load %arg2[%c0, %c0_0] : memref<8x128xf32, #tpu.memory_space<vmem>>, vector<8x128xf32>
    %c0_1 = arith.constant 0 : index
    %c0_2 = arith.constant 0 : index
    %1 = vector.load %arg3[%c0_1, %c0_2] : memref<1x128xf32, #tpu.memory_space<vmem>>, vector<1x128xf32>
    %2 = vector.broadcast %1 : vector<1x128xf32> to vector<8x128xf32>
    %3 = arith.mulf %0, %2 : vector<8x128xf32>
    %c0_3 = arith.constant 0 : index
    %c0_4 = arith.constant 0 : index
    %4 = vector.load %arg4[%c0_3, %c0_4] : memref<8x128xf32, #tpu.memory_space<vmem>>, vector<8x128xf32>
    tpu.vector_store %arg4[%c0_3, %c0_4], %3 {strides = array<i32>} : memref<8x128xf32, #tpu.memory_space<vmem>>, vector<8x128xf32>,
    return
  }
  func.func @transform_0(%arg0: i32, %arg1: i32) -> (i32, i32) {
    %c0_i32 = arith.constant 0 : i32
    return %arg0, %arg1 : i32, i32
  }
  func.func @transform_1(%arg0: i32, %arg1: i32) -> (i32, i32) {
    %c0_i32 = arith.constant 0 : i32
    %c0_i32_0 = arith.constant 0 : i32
    return %c0_i32, %arg1 : i32, i32
  }
  func.func @transform_2(%arg0: i32, %arg1: i32) -> (i32, i32) {
    %c0_i32 = arith.constant 0 : i32
    return %arg0, %arg1 : i32, i32
  }
}

</mosaic_0001>

<llo_original>
// kernel: tpu_custom_call.1
$region0: #{tpu_custom_call.1}
  #allocation0 [shape = 'u32[]', space=smem, size = 0x4, offset = 0x4, fixed_abs, tag = 'smem constant byte address 0x4 - core index']
  #allocation1 [shape = 'u32[72,128]{1,0:T(1,128)}', space=vmem, size = 0x9000, scoped, tag = 'internal scratch']
  %s0 = inlined_call_operand.hbm [shape: f32[8,128], index: 0, kind: input, shape index: {}]
  %s1 = inlined_call_operand.hbm [shape: f32[1,128], index: 1, kind: input, shape index: {}]
  %s2 = inlined_call_operand.hbm [shape: f32[8,128], index: 2, kind: output, shape index: {}]
  %s3 = sld [smem:[#allocation0]]
  $region26: #{tpu_custom_call.1} parent=0
    _
  %s5 = ssub.s32 1, %s3
  %s6 = scalar_select 0, %s5, %s3
  $region1: #{tpu_custom_call.1} parent=0
    #allocation2 [shape = 'u8[4096]{0}', space=vmem, size = 0x1000, scoped, tag = 'input window, operand 0, single buffered']
    #allocation3 [shape = 's32[1]{0}', space=sflag, size = 0x4, scoped, tag = 'scoped memory for tpu_custom_call.1']
    #allocation4 [shape = 's32[1]{0}', space=sflag, size = 0x4, scoped, tag = 'scoped memory for tpu_custom_call.1']
    #allocation5 [shape = 'u8[512]{0}', space=vmem, size = 0x400, scoped, tag = 'input window, operand 1, single buffered']
    #allocation6 [shape = 's32[1]{0}', space=sflag, size = 0x4, scoped, tag = 'scoped memory for tpu_custom_call.1']
    #allocation7 [shape = 'u8[4096]{0}', space=vmem, size = 0x1000, scoped, tag = 'output window, operand 0, single buffered']
    %7 = vsyncpa [#allocation3], 0
    %8 = vsyncpa [#allocation6], 0
    %9 = vsyncpa [#allocation4], 0
    // Predicated region
    $region2: #{tpu_custom_call.1} parent=1 // pred_check
      _
    $region3: #{tpu_custom_call.1} parent=1 // pred_check_branch
      %11 = sbr.rel (0) target = $region5
    $region4: #{tpu_custom_call.1} parent=1 // pred_region
      %13 = vsyncadd [#allocation3], 0
      %s15 = sshll.u32 %s0, 4
      %s16 = int_to_ptr.hbm [resolvable:$true] %s15
      %s17 = sshll.u32 [#allocation2], 4
      %s18 = int_to_ptr.vmem [resolvable:$true] %s17
      %20 = dma.hbm_to_vmem [thread:$0]  %s16, 128, %s18, [#allocation3]
    $region5: #{tpu_custom_call.1} parent=1 // pred_fallthru
      _
    // Predicated region
    $region6: #{tpu_custom_call.1} parent=1 // pred_check
      _
    $region7: #{tpu_custom_call.1} parent=1 // pred_check_branch
      %22 = sbr.rel (0) target = $region9
    $region8: #{tpu_custom_call.1} parent=1 // pred_region
      %24 = vsyncadd [#allocation6], 0
      %s26 = sshll.u32 %s1, 4
      %s27 = int_to_ptr.hbm [resolvable:$true] %s26
      %s28 = sshll.u32 [#allocation5], 4
      %s29 = int_to_ptr.vmem [resolvable:$true] %s28
      %31 = dma.hbm_to_vmem [thread:$0]  %s27, 16, %s29, [#allocation6]
    $region9: #{tpu_custom_call.1} parent=1 // pred_fallthru
      _
    // Predicated region
    $region10: #{tpu_custom_call.1} parent=1 // pred_check
      _
    $region11: #{tpu_custom_call.1} parent=1 // pred_check_branch
      %33 = sbr.rel (0) target = $region13
    $region12: #{tpu_custom_call.1} parent=1 // pred_region
      %35 = dma.done [#allocation3], 128
    $region13: #{tpu_custom_call.1} parent=1 // pred_fallthru
      _
    // Predicated region
    $region14: #{tpu_custom_call.1} parent=1 // pred_check
      _
    $region15: #{tpu_custom_call.1} parent=1 // pred_check_branch
      %37 = sbr.rel (0) target = $region17
    $region16: #{tpu_custom_call.1} parent=1 // pred_region
      %39 = dma.done [#allocation6], 16
    $region17: #{tpu_custom_call.1} parent=1 // pred_fallthru
      _
    %v40 = vld [vmem:[#allocation2] sm:$0xff]
    %v41 = vld [vmem:[#allocation5] sm:$0x1]
    %v43 = vperm.slane %v41, 0
    %v45 = vmul.f32 %v40, %v43
    %46 = vst [vmem:[#allocation7] sm:$0xff] %v45
    // Predicated region
    $region18: #{tpu_custom_call.1} parent=1 // pred_check
      _
    $region19: #{tpu_custom_call.1} parent=1 // pred_check_branch
      %48 = sbr.rel (0) target = $region21
    $region20: #{tpu_custom_call.1} parent=1 // pred_region
      %50 = vsyncadd [#allocation4], 0
      %s52 = sshll.u32 [#allocation7], 4
      %s53 = int_to_ptr.vmem [resolvable:$true] %s52
      %s54 = sshll.u32 %s2, 4
      %s55 = int_to_ptr.hbm [resolvable:$true] %s54
      %57 = dma.vmem_to_hbm [thread:$0]  %s53, 128, %s55, [#allocation4]
    $region21: #{tpu_custom_call.1} parent=1 // pred_fallthru
      _
    // Predicated region
    $region22: #{tpu_custom_call.1} parent=1 // pred_check
      _
    $region23: #{tpu_custom_call.1} parent=1 // pred_check_branch
      %59 = sbr.rel (0) target = $region25
    $region24: #{tpu_custom_call.1} parent=1 // pred_region
      %61 = dma.done [#allocation4], 128
    $region25: #{tpu_custom_call.1} parent=1 // pred_fallthru
      _
    %62 = vsyncpa [#allocation3], 1
    %63 = vsyncpa [#allocation6], 1
    %64 = vsyncpa [#allocation4], 1

</llo_original>
